<compile_context>
chip_gen: v7x
topology: tpu7x:2x2x1
jax: 0.10.0
libtpu: 0.0.40
codegen_flags: <defaults>
</compile_context>

<pallas_src>
import functools

import jax
import jax.numpy as jnp
from jax.experimental import pallas as pl
from jax.experimental.pallas import tpu as pltpu


def _round_up(x, m):
    return ((x + m - 1) // m) * m


# ----------------------------------------------------------------------------
# Pallas kernel: fused  (split-W1 Linear == concat) -> ReLU -> Linear -> softmax
# ----------------------------------------------------------------------------
def _head_kernel(*refs, has_post):
    if has_post:
        (xc_ref, xp_ref, w1a_ref, w1b_ref, b1_ref, w2_ref, b2_ref, out_ref) = refs
    else:
        (xc_ref, w1a_ref, b1_ref, w2_ref, b2_ref, out_ref) = refs

    # hidden layer: Linear(F -> H) + ReLU. concat(xc, xp) @ W1 is computed as
    # xc @ W1a + xp @ W1b so the feature concat never materializes in HBM.
    # bf16 operands, f32 accumulation. (Dropout is identity at inference.)
    h = jnp.dot(xc_ref[...], w1a_ref[...], preferred_element_type=jnp.float32)
    if has_post:
        h = h + jnp.dot(xp_ref[...], w1b_ref[...],
                        preferred_element_type=jnp.float32)
    h = jnp.maximum(h + b1_ref[...], 0.0)                        # [TB, H] f32

    # output layer: Linear(H -> C), unpadded class axis.
    logits = jnp.dot(h.astype(w2_ref.dtype), w2_ref[...],
                     preferred_element_type=jnp.float32) + b2_ref[...]   # [TB, C] f32

    # softmax over the (unpadded) class axis
    m = jnp.max(logits, axis=1, keepdims=True)
    e = jnp.exp(logits - m)
    denom = jnp.sum(e, axis=1, keepdims=True)
    inv = pl.reciprocal(denom, approx=True)                      # EUP slot
    inv = inv * (2.0 - denom * inv)                              # 1 NR step -> f32 accurate
    probs = e * inv

    # single packed, unpadded output: [logits | probs] along lanes -> [TB, 2C]
    out_ref[...] = jnp.concatenate([logits, probs], axis=1)


def classifier_head_pallas(xc, xp, w1a, w1b, b1, w2, b2, *, block_b=2048):
    """xc: [B, Fc], xp: [B, Fp] or None (bf16). Weights bf16, biases f32.

    Returns packed [B, 2*C] float32: lanes [0,C) = logits, lanes [C,2C) = probs.
    """
    B, Fc = xc.shape
    H = w1a.shape[1]           # hidden (unpadded)
    C = w2.shape[1]            # num_classes (unpadded)
    has_post = xp is not None
    Fp = xp.shape[1] if has_post else 0

    # Batch tile: whole batch if tiny (full-array block); otherwise an 8-aligned
    # tile sized so the grid has >= 2 steps (both TCs used on v7x) while the
    # weights stay resident in VMEM. Large tiles amortize per-step overhead.
    if B <= 8:
        TB = B
    else:
        TB = min(block_b, max(8, _round_up(pl.cdiv(B, 2), 8)))
    grid = (pl.cdiv(B, TB),)

    row_spec = lambda cols: pl.BlockSpec((TB, cols), lambda i: (i, 0))
    resident = lambda shape: pl.BlockSpec(shape, lambda i: (0,) * len(shape))

    in_specs = [row_spec(Fc)]
    args = [xc]
    if has_post:
        in_specs.append(row_spec(Fp))
        args.append(xp)
    in_specs.append(resident(w1a.shape))
    args.append(w1a)
    if has_post:
        in_specs.append(resident(w1b.shape))
        args.append(w1b)
    in_specs += [resident(b1.shape), resident(w2.shape), resident(b2.shape)]
    args += [b1, w2, b2]

    f_total = Fc + Fp
    itemsize = jnp.dtype(xc.dtype).itemsize
    cost = pl.CostEstimate(
        flops=2 * B * (f_total * H + H * C),
        transcendentals=B * (C + 1),
        bytes_accessed=(itemsize * (B * f_total + f_total * H + H * C)
                        + 4 * (H + C) + 4 * B * 2 * C),
    )

    packed = pl.pallas_call(
        functools.partial(_head_kernel, has_post=has_post),
        grid=grid,
        in_specs=in_specs,
        out_specs=row_spec(2 * C),
        out_shape=jax.ShapeDtypeStruct((B, 2 * C), jnp.float32),
        compiler_params=pltpu.CompilerParams(
            dimension_semantics=("parallel",)),   # batch axis shards across TCs (v7x)
        cost_estimate=cost,
    )(*args)
    return packed


# ----------------------------------------------------------------------------
# Head1DClassifier wrapper (glue in plain JAX)
# ----------------------------------------------------------------------------
def _init_linear(key, fan_in, fan_out):
    """Deterministic init mimicking torch.nn.Linear default (U[-1/sqrt(in), 1/sqrt(in)])."""
    kw, kb = jax.random.split(key)
    bound = 1.0 / jnp.sqrt(float(fan_in))
    w = jax.random.uniform(kw, (fan_in, fan_out), jnp.float32, -bound, bound)
    b = jax.random.uniform(kb, (1, fan_out), jnp.float32, -bound, bound)
    return w, b


class Head1DClassifierPallas:
    def __init__(self, head_name, conv_inputs, num_classes=2,
                 post_concat_inputs=None, layers_description=(256,), seed=0,
                 param_dtype=jnp.bfloat16):
        # Inference path, post_concat_model=None branch only.
        # TODO(synk): post_concat_model (LinearLayers on the post-concat vector)
        #             not wired; the reference in_ch for that branch is
        #             inconsistent in the original code anyway.
        # TODO(synk): len(layers_description) > 1 (extra hidden layers) and
        #             shared_classifier_head are not implemented.
        assert conv_inputs is not None, "conv_inputs must be provided"
        self.head_name = head_name
        self.conv_inputs = conv_inputs
        self.post_concat_inputs = post_concat_inputs
        self.num_classes = num_classes
        self.compute_dtype = param_dtype

        fc = sum(c[1] for c in conv_inputs)
        fp = sum(p[1] for p in post_concat_inputs) if post_concat_inputs else 0
        feature_depth = fc + fp
        hidden = layers_description[0]

        key = jax.random.PRNGKey(seed)
        k1, k2 = jax.random.split(key)
        # f32 master copies (used by the reference check in __main__)
        self.w1, self.b1 = _init_linear(k1, feature_depth, hidden)
        self.w2, self.b2 = _init_linear(k2, hidden, num_classes)

        # Kernel parameter copies: NO padding of hidden or class dims.
        # Matmul operands in bf16 (f32 accumulation in-kernel); biases in f32.
        self._w1a = self.w1[:fc].astype(param_dtype)                # rows for conv features
        self._w1b = self.w1[fc:].astype(param_dtype) if fp > 0 else None
        self._b1 = self.b1.astype(jnp.float32)                      # (1, hidden)
        self._w2 = self.w2.astype(param_dtype)                      # (hidden, C)
        self._b2 = self.b2.astype(jnp.float32)                      # (1, C)

    def __call__(self, batch_dict):
        # torch.cat over conv / post inputs is along dim=0 (batch); keep in JAX.
        xc = jnp.concatenate(
            [batch_dict[name] for name, _ in self.conv_inputs], axis=0
        ).astype(self.compute_dtype)
        xp = None
        if self.post_concat_inputs is not None:
            xp = jnp.concatenate(
                [batch_dict[name] for name, _ in self.post_concat_inputs], axis=0
            ).astype(self.compute_dtype)
        # The dim=1 feature concat is fused into the kernel (split-W1 matmul).

        packed = classifier_head_pallas(
            xc, xp, self._w1a, self._w1b, self._b1, self._w2, self._b2)

        C = self.num_classes
        batch_dict["model.logits." + self.head_name] = packed[:, :C]
        batch_dict["model.output." + self.head_name] = packed[:, C:2 * C]
        return batch_dict


# ----------------------------------------------------------------------------
if __name__ == "__main__":
    B = 2
    C_CONV = 24      # backbone feature depth
    C_POST = 8       # clinical vector depth
    NUM_CLASSES = 2
    HIDDEN = 32

    key = jax.random.PRNGKey(0)
    k_feat, k_clin = jax.random.split(key)
    backbone_features = jax.random.normal(k_feat, (B, C_CONV), jnp.float32)
    clinical = jax.random.normal(k_clin, (B, C_POST), jnp.float32)

    batch_dict = {
        "model.backbone_features": backbone_features,
        "data.clinical": clinical,
    }

    head = Head1DClassifierPallas(
        head_name="head_0",
        conv_inputs=(("model.backbone_features", C_CONV),),
        post_concat_inputs=(("data.clinical", C_POST),),
        num_classes=NUM_CLASSES,
        layers_description=(HIDDEN,),
        seed=0,
    )

    out = head(batch_dict)
    logits = jax.block_until_ready(out["model.logits.head_0"])
    probs = jax.block_until_ready(out["model.output.head_0"])

    # sanity: reference in plain JAX with the unquantized f32 parameters
    res = jnp.concatenate([backbone_features, clinical], axis=1)
    h_ref = jnp.maximum(res @ head.w1 + head.b1, 0.0)
    logits_ref = h_ref @ head.w2 + head.b2
    probs_ref = jax.nn.softmax(logits_ref, axis=1)

    assert logits.shape == (B, NUM_CLASSES)
    assert probs.shape == (B, NUM_CLASSES)
    # bf16 matmul operands (f32 accumulation) -> loosened tolerances vs f32 ref.
    assert jnp.allclose(logits, logits_ref, atol=5e-2), float(jnp.abs(logits - logits_ref).max())
    assert jnp.allclose(probs, probs_ref, atol=3e-2), float(jnp.abs(probs - probs_ref).max())

    print("KERNEL_OK")
</pallas_src>

<mosaic_0001>
module attributes {stable_mosaic.version = 11 : i64} {
  func.func @_head_kernel(%arg0: i32, %arg1: memref<2x24xbf16, #tpu.memory_space<vmem>>, %arg2: memref<2x8xbf16, #tpu.memory_space<vmem>>, %arg3: memref<24x32xbf16, #tpu.memory_space<vmem>>, %arg4: memref<8x32xbf16, #tpu.memory_space<vmem>>, %arg5: memref<1x32xf32, #tpu.memory_space<vmem>>, %arg6: memref<32x2xbf16, #tpu.memory_space<vmem>>, %arg7: memref<1x2xf32, #tpu.memory_space<vmem>>, %arg8: memref<2x4xf32, #tpu.memory_space<vmem>>) attributes {dimension_semantics = [#tpu.dimension_semantics<parallel>], iteration_bounds = array<i64: 1>, scalar_prefetch = 0 : i64, scratch_operands = 0 : i64, tpu.core_type = #tpu.core_type<tc>, window_params = [{transform_indices = @transform_0, window_bounds = array<i64: 2, 24>}, {transform_indices = @transform_1, window_bounds = array<i64: 2, 8>}, {pipeline_mode = #tpu.pipeline_mode<synchronous>, transform_indices = @transform_2, window_bounds = array<i64: 24, 32>}, {pipeline_mode = #tpu.pipeline_mode<synchronous>, transform_indices = @transform_3, window_bounds = array<i64: 8, 32>}, {pipeline_mode = #tpu.pipeline_mode<synchronous>, transform_indices = @transform_4, window_bounds = array<i64: 1, 32>}, {pipeline_mode = #tpu.pipeline_mode<synchronous>, transform_indices = @transform_5, window_bounds = array<i64: 32, 2>}, {pipeline_mode = #tpu.pipeline_mode<synchronous>, transform_indices = @transform_6, window_bounds = array<i64: 1, 2>}, {transform_indices = @transform_7, window_bounds = array<i64: 2, 4>}]} {
    %c0 = arith.constant 0 : index
    %c0_0 = arith.constant 0 : index
    %0 = vector.load %arg1[%c0, %c0_0] : memref<2x24xbf16, #tpu.memory_space<vmem>>, vector<2x24xbf16>
    %c0_1 = arith.constant 0 : index
    %c0_2 = arith.constant 0 : index
    %1 = vector.load %arg3[%c0_1, %c0_2] : memref<24x32xbf16, #tpu.memory_space<vmem>>, vector<24x32xbf16>
    %cst = arith.constant dense<0.000000e+00> : vector<2x32xf32>
    %2 = tpu.matmul %0, %1, %cst {dimension_numbers = #tpu.dot_dimension_numbers<[1], [0], [0], [1], [0, 0, 1, 1], [], []>} : vector<2x24xbf16>, vector<24x32xbf16>, vector<2x32xf32> -> vector<2x32xf32>
    %c0_3 = arith.constant 0 : index
    %c0_4 = arith.constant 0 : index
    %3 = vector.load %arg2[%c0_3, %c0_4] : memref<2x8xbf16, #tpu.memory_space<vmem>>, vector<2x8xbf16>
    %c0_5 = arith.constant 0 : index
    %c0_6 = arith.constant 0 : index
    %4 = vector.load %arg4[%c0_5, %c0_6] : memref<8x32xbf16, #tpu.memory_space<vmem>>, vector<8x32xbf16>
    %cst_7 = arith.constant dense<0.000000e+00> : vector<2x32xf32>
    %5 = tpu.matmul %3, %4, %cst_7 {dimension_numbers = #tpu.dot_dimension_numbers<[1], [0], [0], [1], [0, 0, 1, 1], [], []>} : vector<2x8xbf16>, vector<8x32xbf16>, vector<2x32xf32> -> vector<2x32xf32>
    %6 = arith.addf %2, %5 : vector<2x32xf32>
    %c0_8 = arith.constant 0 : index
    %c0_9 = arith.constant 0 : index
    %7 = vector.load %arg5[%c0_8, %c0_9] : memref<1x32xf32, #tpu.memory_space<vmem>>, vector<1x32xf32>
    %8 = vector.broadcast %7 : vector<1x32xf32> to vector<2x32xf32>
    %9 = arith.addf %6, %8 : vector<2x32xf32>
    %cst_10 = arith.constant 0.000000e+00 : f32
    %10 = vector.broadcast %cst_10 : f32 to vector<2x32xf32>
    %11 = arith.maximumf %9, %10 : vector<2x32xf32>
    %12 = arith.truncf %11 : vector<2x32xf32> to vector<2x32xbf16>
    %c0_11 = arith.constant 0 : index
    %c0_12 = arith.constant 0 : index
    %13 = vector.load %arg6[%c0_11, %c0_12] : memref<32x2xbf16, #tpu.memory_space<vmem>>, vector<32x2xbf16>
    %cst_13 = arith.constant dense<0.000000e+00> : vector<2x2xf32>
    %14 = tpu.matmul %12, %13, %cst_13 {dimension_numbers = #tpu.dot_dimension_numbers<[1], [0], [0], [1], [0, 0, 1, 1], [], []>} : vector<2x32xbf16>, vector<32x2xbf16>, vector<2x2xf32> -> vector<2x2xf32>
    %c0_14 = arith.constant 0 : index
    %c0_15 = arith.constant 0 : index
    %15 = vector.load %arg7[%c0_14, %c0_15] : memref<1x2xf32, #tpu.memory_space<vmem>>, vector<1x2xf32>
    %16 = vector.broadcast %15 : vector<1x2xf32> to vector<2x2xf32>
    %17 = arith.addf %14, %16 : vector<2x2xf32>
    %cst_16 = arith.constant dense<0xFF800000> : vector<2xf32>
    %18 = vector.multi_reduction <maximumf>, %17, %cst_16 [1] : vector<2x2xf32> to vector<2xf32>
    %19 = vector.shape_cast %18 : vector<2xf32> to vector<2x1xf32>
    %20 = vector.broadcast %19 : vector<2x1xf32> to vector<2x2xf32>
    %21 = arith.subf %17, %20 : vector<2x2xf32>
    %22 = math.exp %21 : vector<2x2xf32>
    %cst_17 = arith.constant dense<0.000000e+00> : vector<2xf32>
    %23 = vector.multi_reduction <add>, %22, %cst_17 [1] : vector<2x2xf32> to vector<2xf32>
    %24 = vector.shape_cast %23 : vector<2xf32> to vector<2x1xf32>
    %25 = tpu.reciprocal %24 {approx = true} : vector<2x1xf32> -> vector<2x1xf32>
    %26 = arith.mulf %24, %25 : vector<2x1xf32>
    %cst_18 = arith.constant 2.000000e+00 : f32
    %27 = vector.broadcast %cst_18 : f32 to vector<2x1xf32>
    %28 = arith.subf %27, %26 : vector<2x1xf32>
    %29 = arith.mulf %25, %28 : vector<2x1xf32>
    %30 = vector.broadcast %29 : vector<2x1xf32> to vector<2x2xf32>
    %31 = arith.mulf %22, %30 : vector<2x2xf32>
    %32 = tpu.concatenate %17, %31 in 1 : vector<2x2xf32>, vector<2x2xf32> -> vector<2x4xf32>
    %c0_19 = arith.constant 0 : index
    %c0_20 = arith.constant 0 : index
    %33 = vector.load %arg8[%c0_19, %c0_20] : memref<2x4xf32, #tpu.memory_space<vmem>>, vector<2x4xf32>
    tpu.vector_store %arg8[%c0_19, %c0_20], %32 {strides = array<i32>} : memref<2x4xf32, #tpu.memory_space<vmem>>, vector<2x4xf32>,
    return
  }
  func.func @transform_0(%arg0: i32) -> (i32, i32) {
    %c0_i32 = arith.constant 0 : i32
    %c0_i32_0 = arith.constant 0 : i32
    return %arg0, %c0_i32 : i32, i32
  }
  func.func @transform_1(%arg0: i32) -> (i32, i32) {
    %c0_i32 = arith.constant 0 : i32
    %c0_i32_0 = arith.constant 0 : i32
    return %arg0, %c0_i32 : i32, i32
  }
  func.func @transform_2(%arg0: i32) -> (i32, i32) {
    %c0_i32 = arith.constant 0 : i32
    %c0_i32_0 = arith.constant 0 : i32
    %c0_i32_1 = arith.constant 0 : i32
    return %c0_i32, %c0_i32_0 : i32, i32
  }
  func.func @transform_3(%arg0: i32) -> (i32, i32) {
    %c0_i32 = arith.constant 0 : i32
    %c0_i32_0 = arith.constant 0 : i32
    %c0_i32_1 = arith.constant 0 : i32
    return %c0_i32, %c0_i32_0 : i32, i32
  }
  func.func @transform_4(%arg0: i32) -> (i32, i32) {
    %c0_i32 = arith.constant 0 : i32
    %c0_i32_0 = arith.constant 0 : i32
    %c0_i32_1 = arith.constant 0 : i32
    return %c0_i32, %c0_i32_0 : i32, i32
  }
  func.func @transform_5(%arg0: i32) -> (i32, i32) {
    %c0_i32 = arith.constant 0 : i32
    %c0_i32_0 = arith.constant 0 : i32
    %c0_i32_1 = arith.constant 0 : i32
    return %c0_i32, %c0_i32_0 : i32, i32
  }
  func.func @transform_6(%arg0: i32) -> (i32, i32) {
    %c0_i32 = arith.constant 0 : i32
    %c0_i32_0 = arith.constant 0 : i32
    %c0_i32_1 = arith.constant 0 : i32
    return %c0_i32, %c0_i32_0 : i32, i32
  }
  func.func @transform_7(%arg0: i32) -> (i32, i32) {
    %c0_i32 = arith.constant 0 : i32
    %c0_i32_0 = arith.constant 0 : i32
    return %arg0, %c0_i32 : i32, i32
  }
}

</mosaic_0001>

<llo_original>
// kernel: tpu_custom_call.1
$region0: #{tpu_custom_call.1}
  #allocation0 [shape = 'u32[]', space=smem, size = 0x4, offset = 0x4, fixed_abs, tag = 'smem constant byte address 0x4 - core index']
  #allocation1 [shape = 'u32[144,128]{1,0:T(1,128)}', space=vmem, size = 0x12000, scoped, tag = 'internal scratch']
  %s0 = inlined_call_operand.vmem [shape: bf16[2,24], index: 0, kind: input, shape index: {}]
  %s1 = inlined_call_operand.vmem [shape: bf16[2,8], index: 1, kind: input, shape index: {}]
  %s2 = inlined_call_operand.vmem [shape: bf16[24,32], index: 2, kind: input, shape index: {}]
  %s3 = inlined_call_operand.vmem [shape: bf16[8,32], index: 3, kind: input, shape index: {}]
  %s4 = inlined_call_operand.vmem [shape: f32[1,32], index: 4, kind: input, shape index: {}]
  %s5 = inlined_call_operand.vmem [shape: bf16[32,2], index: 5, kind: input, shape index: {}]
  %s6 = inlined_call_operand.vmem [shape: f32[1,2], index: 6, kind: input, shape index: {}]
  %s7 = inlined_call_operand.hbm [shape: f32[2,4], index: 7, kind: output, shape index: {}]
  %s8 = sld [smem:[#allocation0]]
  $region38: #{tpu_custom_call.1} parent=0
    _
  %s10 = ssub.s32 1, %s8
  %s11 = scalar_select 0, %s10, %s8
  $region1: #{tpu_custom_call.1} parent=0
    #allocation2 [shape = 'u8[1024]{0}', space=vmem, size = 0x400, scoped, tag = 'output window, operand 0, single buffered']
    #allocation3 [shape = 's32[1]{0}', space=sflag, size = 0x4, scoped, tag = 'scoped memory for tpu_custom_call.1']
    %12 = vsyncpa [#allocation3], 0
    // Predicated region
    $region2: #{tpu_custom_call.1} parent=1 // pred_check
      _
    $region3: #{tpu_custom_call.1} parent=1 // pred_check_branch
      %14 = sbr.rel (0) target = $region5
    $region4: #{tpu_custom_call.1} parent=1 // pred_region
      _
    $region5: #{tpu_custom_call.1} parent=1 // pred_fallthru
      _
    // Predicated region
    $region6: #{tpu_custom_call.1} parent=1 // pred_check
      _
    $region7: #{tpu_custom_call.1} parent=1 // pred_check_branch
      %16 = sbr.rel (0) target = $region9
    $region8: #{tpu_custom_call.1} parent=1 // pred_region
      _
    $region9: #{tpu_custom_call.1} parent=1 // pred_fallthru
      _
    // Predicated region
    $region10: #{tpu_custom_call.1} parent=1 // pred_check
      _
    $region11: #{tpu_custom_call.1} parent=1 // pred_check_branch
      %18 = sbr.rel (0) target = $region13
    $region12: #{tpu_custom_call.1} parent=1 // pred_region
      _
    $region13: #{tpu_custom_call.1} parent=1 // pred_fallthru
      _
    // Predicated region
    $region14: #{tpu_custom_call.1} parent=1 // pred_check
      _
    $region15: #{tpu_custom_call.1} parent=1 // pred_check_branch
      %20 = sbr.rel (0) target = $region17
    $region16: #{tpu_custom_call.1} parent=1 // pred_region
      _
    $region17: #{tpu_custom_call.1} parent=1 // pred_fallthru
      _
    // Predicated region
    $region18: #{tpu_custom_call.1} parent=1 // pred_check
      _
    $region19: #{tpu_custom_call.1} parent=1 // pred_check_branch
      %22 = sbr.rel (0) target = $region21
    $region20: #{tpu_custom_call.1} parent=1 // pred_region
      _
    $region21: #{tpu_custom_call.1} parent=1 // pred_fallthru
      _
    // Predicated region
    $region22: #{tpu_custom_call.1} parent=1 // pred_check
      _
    $region23: #{tpu_custom_call.1} parent=1 // pred_check_branch
      %24 = sbr.rel (0) target = $region25
    $region24: #{tpu_custom_call.1} parent=1 // pred_region
      _
    $region25: #{tpu_custom_call.1} parent=1 // pred_fallthru
      _
    // Predicated region
    $region26: #{tpu_custom_call.1} parent=1 // pred_check
      _
    $region27: #{tpu_custom_call.1} parent=1 // pred_check_branch
      %26 = sbr.rel (0) target = $region29
    $region28: #{tpu_custom_call.1} parent=1 // pred_region
      _
    $region29: #{tpu_custom_call.1} parent=1 // pred_fallthru
      _
    %v28 = vld [vmem:[%s0] sm:$0x1]
    %v29 = vld [vmem:[%s2] sm:$0xf]
    %v30 = vld [vmem:[%s2 + $0x4] sm:$0xf]
    %v31 = vld [vmem:[%s2 + $0x8] sm:$0xf]
    %v32 = vld [vmem:[%s1] sm:$0x1]
    %v33 = vld [vmem:[%s3] sm:$0xf]
    %vm34 = vcmask 64512
    %v36 = vsel %vm34, %v32, 0
    %vm38 = vcmask 1043456
    %v40 = vsel %vm38, %v33, 0
    %42 = vmatprep.subr.bf16.mxu0 0
    %43 = vmatpush1.bf16.msra.mxu0 %v40
    %44 = vmatprep.subr.bf16.mxu0 0
    %45 = vmatpush1.bf16.msra.mxu0 0
    %46 = vmatprep.subr.bf16.mxu0 0
    %47 = vmatpush1.bf16.msra.mxu0 0
    %48 = vmatprep.subr.bf16.mxu0 0
    %49 = vmatpush1.bf16.msra.mxu0 0
    %50 = vmatprep.subr.bf16.mxu0 0
    %51 = vmatpush1.bf16.msra.mxu0 0
    %52 = vmatprep.subr.bf16.mxu0 0
    %53 = vmatpush1.bf16.msra.mxu0 0
    %54 = vmatprep.subr.bf16.mxu0 0
    %55 = vmatpush1.bf16.msra.mxu0 0
    %56 = vmatprep.subr.bf16.mxu0 0
    %57 = vmatpush1.bf16.msra.mxu0 0
    %58 = vmatprep.subr.bf16.mxu0 0
    %59 = vmatpush1.bf16.msra.mxu0 0
    %60 = vmatprep.subr.bf16.mxu0 0
    %61 = vmatpush1.bf16.msra.mxu0 0
    %62 = vmatprep.subr.bf16.mxu0 0
    %63 = vmatpush1.bf16.msra.mxu0 0
    %64 = vmatprep.subr.bf16.mxu0 0
    %65 = vmatpush1.bf16.msra.mxu0 0
    %66 = vmatprep.subr.bf16.mxu0 0
    %67 = vmatpush1.bf16.msra.mxu0 0
    %68 = vmatprep.subr.bf16.mxu0 0
    %69 = vmatpush1.bf16.msra.mxu0 0
    %70 = vmatprep.subr.bf16.mxu0 0
    %71 = vmatpush1.bf16.msra.mxu0 0
    %72 = vmatprep.subr.bf16.mxu0 0
    %73 = vmatpush1.bf16.msra.mxu0 0
    %74 = vmatprep.mubr.bf16.mxu0 0
    %75 = vmatmul.mubr.bf16.gmra.mrb[0].mxu0 %v36
    %v76 = vpop.f32.mrb[0].mxu0
    %v77 = vadd.f32 0.0, %v76
    %v78 = vpop.f32.mrb[0].mxu0
    %v79 = vpop.f32.mrb[0].mxu0
    %v80 = vpop.f32.mrb[0].mxu0
    %81 = vdwg.mxu0
    %v85 = vunpack.c.l.b16 %v29
    %v86 = vunpack.c.l.b16 %v30
    %v87 = vunpack.c.l.b16 %v31
    %v88 = vpack.c.b16 %v86, %v85
    %v89 = vpack.c.b16 %v87, %v87
    %vm91 = vcmask 195584
    %v93 = vsel %vm91, %v28, 0
    %v96 = vsel %vm38, %v89, 0
    %98 = vmatprep.subr.bf16.mxu0 0
    %99 = vmatpush1.bf16.msra.mxu0 %v88
    %100 = vmatprep.subr.bf16.mxu0 0
    %101 = vmatpush1.bf16.msra.mxu0 %v96
    %102 = vmatprep.subr.bf16.mxu0 0
    %103 = vmatpush1.bf16.msra.mxu0 0
    %104 = vmatprep.subr.bf16.mxu0 0
    %105 = vmatpush1.bf16.msra.mxu0 0
    %106 = vmatprep.subr.bf16.mxu0 0
    %107 = vmatpush1.bf16.msra.mxu0 0
    %108 = vmatprep.subr.bf16.mxu0 0
    %109 = vmatpush1.bf16.msra.mxu0 0
    %110 = vmatprep.subr.bf16.mxu0 0
    %111 = vmatpush1.bf16.msra.mxu0 0
    %112 = vmatprep.subr.bf16.mxu0 0
    %113 = vmatpush1.bf16.msra.mxu0 0
    %114 = vmatprep.subr.bf16.mxu0 0
    %115 = vmatpush1.bf16.msra.mxu0 0
    %116 = vmatprep.subr.bf16.mxu0 0
    %117 = vmatpush1.bf16.msra.mxu0 0
    %118 = vmatprep.subr.bf16.mxu0 0
    %119 = vmatpush1.bf16.msra.mxu0 0
    %120 = vmatprep.subr.bf16.mxu0 0
    %121 = vmatpush1.bf16.msra.mxu0 0
    %122 = vmatprep.subr.bf16.mxu0 0
    %123 = vmatpush1.bf16.msra.mxu0 0
    %124 = vmatprep.subr.bf16.mxu0 0
    %125 = vmatpush1.bf16.msra.mxu0 0
    %126 = vmatprep.subr.bf16.mxu0 0
    %127 = vmatpush1.bf16.msra.mxu0 0
    %128 = vmatprep.subr.bf16.mxu0 0
    %129 = vmatpush1.bf16.msra.mxu0 0
    %130 = vmatprep.mubr.bf16.mxu0 0
    %131 = vmatmul.mubr.bf16.gmra.mrb[0].mxu0 %v93
    %v132 = vpop.f32.mrb[0].mxu0
    %v133 = vadd.f32 %v77, %v132
    %v134 = vpop.f32.mrb[0].mxu0
    %v135 = vpop.f32.mrb[0].mxu0
    %v136 = vpop.f32.mrb[0].mxu0
    %137 = vdwg.mxu0
    %v138 = vld [vmem:[%s4] sm:$0x1]
    %v140 = vlaneseq
    %v141 = vshrl.u32 %v140, 7
    %v142 = vsub.s32 0, %v141
    %v143 = vrot.slane %v138, %v142
    %v145 = vadd.f32 %v133, %v143
    %v146 = vmax.f32 %v145, 0.0
    %v147 = vpack.c.bf16 %v146, %v146
    %v148 = vld [vmem:[%s5] sm:$0xf]
    %v149 = vld [vmem:[%s5 + $0x4] sm:$0xf]
    %v150 = vld [vmem:[%s5 + $0x8] sm:$0xf]
    %v151 = vld [vmem:[%s5 + $0xc] sm:$0xf]
    %v152 = vld [vmem:[%s6] sm:$0x1]
    %v154 = vlaneseq
    %v155 = vshrl.u32 %v154, 7
    %v156 = vsub.s32 0, %v155
    %v157 = vrot.slane %v152, %v156
    %v163 = vunpack.c.l.b16 %v148
    %v164 = vunpack.c.l.b16 %v149
    %v165 = vunpack.c.l.b16 %v150
    %v166 = vunpack.c.l.b16 %v151
    %v167 = vpack.c.b16 %v164, %v163
    %v168 = vpack.c.b16 %v166, %v165
    %vm171 = vcmask 261120
    %v173 = vsel %vm171, %v147, 0
    %175 = vmatprep.subr.bf16.mxu0 0
    %176 = vmatpush1.bf16.msra.mxu0 %v167
    %177 = vmatprep.subr.bf16.mxu0 0
    %178 = vmatpush1.bf16.msra.mxu0 %v168
    %179 = vmatprep.subr.bf16.mxu0 0
    %180 = vmatpush1.bf16.msra.mxu0 0
    %181 = vmatprep.subr.bf16.mxu0 0
    %182 = vmatpush1.bf16.msra.mxu0 0
    %183 = vmatprep.subr.bf16.mxu0 0
    %184 = vmatpush1.bf16.msra.mxu0 0
    %185 = vmatprep.subr.bf16.mxu0 0
    %186 = vmatpush1.bf16.msra.mxu0 0
    %187 = vmatprep.subr.bf16.mxu0 0
    %188 = vmatpush1.bf16.msra.mxu0 0
    %189 = vmatprep.subr.bf16.mxu0 0
    %190 = vmatpush1.bf16.msra.mxu0 0
    %191 = vmatprep.subr.bf16.mxu0 0
    %192 = vmatpush1.bf16.msra.mxu0 0
    %193 = vmatprep.subr.bf16.mxu0 0
    %194 = vmatpush1.bf16.msra.mxu0 0
    %195 = vmatprep.subr.bf16.mxu0 0
    %196 = vmatpush1.bf16.msra.mxu0 0
    %197 = vmatprep.subr.bf16.mxu0 0
    %198 = vmatpush1.bf16.msra.mxu0 0
    %199 = vmatprep.subr.bf16.mxu0 0
    %200 = vmatpush1.bf16.msra.mxu0 0
    %201 = vmatprep.subr.bf16.mxu0 0
    %202 = vmatpush1.bf16.msra.mxu0 0
    %203 = vmatprep.subr.bf16.mxu0 0
    %204 = vmatpush1.bf16.msra.mxu0 0
    %205 = vmatprep.subr.bf16.mxu0 0
    %206 = vmatpush1.bf16.msra.mxu0 0
    %207 = vmatprep.mubr.bf16.mxu0 0
    %208 = vmatmul.mubr.bf16.gmra.mrb[0].mxu0 %v173
    %v209 = vpop.f32.mrb[0].mxu0
    %v210 = vadd.f32 %v157, %v209
    %v211 = vpop.f32.mrb[0].mxu0
    %v212 = vpop.f32.mrb[0].mxu0
    %v213 = vpop.f32.mrb[0].mxu0
    %214 = vdwg.mxu0
    %vm215 = vcmask 9216
    %v216 = vsel %vm215, %v210, -inf
    %217 = vmax.xlane.f32.xlu0 %v216
    %v218 = vpop.xlane.xlu0 %217
    %v219 = vsub.f32 %v210, %v218
    %v220 = vmul.f32 %v219, 1.442695
    %v221 = vpow.pop %v220
    %v222 = vsel %vm215, %v221, 0.0
    %223 = vadd.xlane.f32.xlu0 %v222
    %v224 = vpop.xlane.xlu0 %223
    %v225 = vrcp.pop %v224
    %v226 = vmul.f32 %v224, %v225
    %v227 = vsub.f32 2.0, %v226
    %v228 = vmul.f32 %v225, %v227
    %v229 = vmul.f32 %v221, %v228
    %231 = vrot.lane.b32.xlu0 %v229, 2
    %v232 = vpop.permute.xlu0 %231
    %vm234 = vcmask 15360
    %v235 = vsel %vm234, %v210, %v232
    %vm236 = vcmask 25600
    %237 = vst.msk [vmem:[#allocation2] sm:$0x3] %vm236, %v235
    // Predicated region
    $region30: #{tpu_custom_call.1} parent=1 // pred_check
      _
    $region31: #{tpu_custom_call.1} parent=1 // pred_check_branch
      %239 = sbr.rel (0) target = $region33
    $region32: #{tpu_custom_call.1} parent=1 // pred_region
      %s241 = ssub.s32 32, 32
      %242 = vsyncadd [#allocation3], %s241
      %s244 = sshll.u32 [#allocation2], 4
      %s245 = int_to_ptr.vmem [resolvable:$true] %s244
      %247 = dma.vmem_to_hbm [thread:$0]  %s245, 32, %s7, [#allocation3]
    $region33: #{tpu_custom_call.1} parent=1 // pred_fallthru
      _
    // Predicated region
    $region34: #{tpu_custom_call.1} parent=1 // pred_check
      _
    $region35: #{tpu_custom_call.1} parent=1 // pred_check_branch
      %249 = sbr.rel (0) target = $region37
    $region36: #{tpu_custom_call.1} parent=1 // pred_region
      %250 = dma.done [#allocation3], 32
    $region37: #{tpu_custom_call.1} parent=1 // pred_fallthru
      _
    %251 = vsyncpa [#allocation3], 1

</llo_original>
